<compile_context>
chip_gen: v5e
topology: v5e:2x2
jax: 0.10.0
libtpu: 0.0.40
codegen_flags: <defaults>
</compile_context>

<pallas_src>
import functools
import math

import jax
import jax.numpy as jnp
from jax.experimental import pallas as pl
from jax.experimental.pallas import tpu as pltpu

_LANES = 128
_SUBLANES = 8
_TARGET_ROWS = 2048  # ~1 MiB per f32 input buffer per block.


def _dice_kernel(epsilon, true_d, rows_block, needs_mask,
                 logits_ref, targets_ref, dice_ref, inter_acc, card_acc):
    """grid = (N, K): axis 0 (parallel) walks samples, axis 1 walks row-chunks.

    logits_ref / targets_ref: (rows_block, 128) tile of sample i, native dtype.
    dice_ref: (1, 1) f32 per-sample output block (written at the last chunk).
    inter_acc / card_acc: (8, 128) f32 VMEM partial sums for the current sample.
    """
    k = pl.program_id(1)
    last_k = pl.num_programs(1) - 1

    @pl.when(k == 0)
    def _init_sample():
        inter_acc[...] = jnp.zeros_like(inter_acc)
        card_acc[...] = jnp.zeros_like(card_acc)

    def _accumulate(mask_tail):
        x = logits_ref[...].astype(jnp.float32)          # (rb, 128)
        t = targets_ref[...].astype(jnp.float32)
        # TODO(synk): on v7x with narrow inputs, profile the EUP slot; if it
        # saturates, compute the sigmoid in bf16 and cast to f32 for the adds.
        probs = jax.nn.sigmoid(x)                        # EUP
        if mask_tail:
            # Mask rows/lanes past the true (unpadded) sample length.  The
            # row-granular compare avoids int32 overflow for huge volumes.
            full_rows, rem = divmod(true_d, _LANES)
            row = jax.lax.broadcasted_iota(jnp.int32, x.shape, 0) + k * rows_block
            lane = jax.lax.broadcasted_iota(jnp.int32, x.shape, 1)
            valid = (row < full_rows) | ((row == full_rows) & (lane < rem))
            probs = jnp.where(valid, probs, 0.0)
            t = jnp.where(valid, t, 0.0)
        rb = x.shape[0]
        # Fold rows into vreg-shaped (8, 128) partials: pure elementwise VPU
        # adds, no cross-lane reduce in the steady state.  The two cardinality
        # reductions are fused into one reduce of (probs + targets).
        inter_acc[...] += jnp.sum(
            (probs * t).reshape(rb // _SUBLANES, _SUBLANES, _LANES), axis=0)
        card_acc[...] += jnp.sum(
            (probs + t).reshape(rb // _SUBLANES, _SUBLANES, _LANES), axis=0)

    if needs_mask:
        # Only the last chunk can contain out-of-range rows/lanes; keep the
        # steady-state loop free of mask arithmetic.
        @pl.when(k == last_k)
        def _tail():
            _accumulate(True)

        @pl.when(k != last_k)
        def _body():
            _accumulate(False)
    else:
        _accumulate(False)

    @pl.when(k == last_k)
    def _finalize_sample():
        inter = jnp.sum(inter_acc[...], keepdims=True)   # one XLU reduce / sample
        card = jnp.sum(card_acc[...], keepdims=True)
        dice_ref[...] = (2.0 * inter + epsilon) / (card + epsilon)


def _round_up(v, m):
    return ((v + m - 1) // m) * m


def _row_unit(*dtypes):
    """Smallest legal row-block granularity for the native input dtypes."""
    unit = _SUBLANES
    for dt in dtypes:
        packing = max(1, 4 // jnp.dtype(dt).itemsize)   # f32:1, bf16:2, int8/bool:4
        unit = max(unit, _SUBLANES * packing)
    return unit


def per_volume_dice_loss(logits, targets, epsilon=1e-6):
    """Pallas TPU implementation of PerVolumeDiceLoss.forward.

    logits / targets: [N, C, H, W] (any trailing dims).  The kernel is
    HBM-bound: keep inputs narrow end-to-end (bf16 logits, int8/uint8/bool
    targets) — they are streamed in their native dtype and up-cast per tile;
    accumulation is f32.  Do NOT cast to f32 at the call site: that only adds
    HBM traffic.
    """
    assert logits.shape == targets.shape
    n = logits.shape[0]
    d = int(math.prod(logits.shape[1:]))
    assert d > 0

    x = logits.reshape(n, d)     # free view, native dtype
    t = targets.reshape(n, d)

    unit = _row_unit(x.dtype, t.dtype)
    if d % _LANES == 0 and d // _LANES >= unit:
        # Common path: (n, d) -> (n, rows, 128) is a free reshape, no HBM copy.
        n_rows = d // _LANES
    else:
        # Rare fallback (ragged last dim or tiny volume): zero-pad the
        # flattened axis.  Padded values are irrelevant — the kernel masks by
        # the true element count — so this is dtype-safe (bool/int8 included).
        d_pad = _round_up(d, unit * _LANES)
        x = jnp.pad(x, ((0, 0), (0, d_pad - d)))
        t = jnp.pad(t, ((0, 0), (0, d_pad - d)))
        n_rows = d_pad // _LANES
    x = x.reshape(n, n_rows, _LANES)
    t = t.reshape(n, n_rows, _LANES)

    rows_block = min(_TARGET_ROWS, (n_rows // unit) * unit)
    num_k = pl.cdiv(n_rows, rows_block)
    needs_mask = (n_rows * _LANES != d) or (n_rows % rows_block != 0)

    kernel = functools.partial(_dice_kernel, float(epsilon), d, rows_block,
                               needs_mask)

    in_itemsize = x.dtype.itemsize + t.dtype.itemsize
    # Transparent VMEM budget: double-buffered native-dtype input blocks plus
    # the f32 temporaries the body materialises, plus headroom.
    block_elems = rows_block * _LANES
    vmem_need = (2 * block_elems * in_itemsize         # 2 bufs x (logits + targets)
                 + 6 * block_elems * 4                 # f32 temporaries
                 + 2 * _SUBLANES * _LANES * 4)         # accumulators
    vmem_limit = min(max(int(vmem_need * 1.25), 32 * 1024 * 1024),
                     64 * 1024 * 1024)

    cost = pl.CostEstimate(
        flops=5 * n * d,
        transcendentals=n * d,
        bytes_accessed=n * d * in_itemsize + n * 4,
    )

    dice = pl.pallas_call(
        kernel,
        out_shape=jax.ShapeDtypeStruct((n, 1, 1), jnp.float32),
        grid_spec=pltpu.PrefetchScalarGridSpec(
            num_scalar_prefetch=0,
            grid=(n, num_k),
            in_specs=[
                pl.BlockSpec((None, rows_block, _LANES), lambda i, k: (i, k, 0)),
                pl.BlockSpec((None, rows_block, _LANES), lambda i, k: (i, k, 0)),
            ],
            out_specs=pl.BlockSpec((None, 1, 1), lambda i, k: (i, 0, 0)),
            scratch_shapes=[
                pltpu.VMEM((_SUBLANES, _LANES), jnp.float32),  # intersection
                pltpu.VMEM((_SUBLANES, _LANES), jnp.float32),  # cardinality
            ],
        ),
        compiler_params=pltpu.CompilerParams(
            # Sample axis is independent -> sharded across v7x's 2 TensorCores;
            # the row-chunk (reduction) axis carries the accumulators.
            # TODO(synk): when N == 1, split the row axis across cores instead
            # (per-core partial inter/card outputs combined in the wrapper).
            dimension_semantics=("parallel", "arbitrary"),
            vmem_limit_bytes=int(vmem_limit),
        ),
        cost_estimate=cost,
    )(x, t)

    return 1.0 - jnp.mean(dice)


def _reference_dice_loss(logits, targets, epsilon=1e-6):
    n = logits.shape[0]
    p = jax.nn.sigmoid(logits.astype(jnp.float32)).reshape(n, -1)
    t = targets.astype(jnp.float32).reshape(n, -1)
    inter = jnp.sum(p * t, axis=1)
    card = jnp.sum(p, axis=1) + jnp.sum(t, axis=1)
    dice = (2.0 * inter + epsilon) / (card + epsilon)
    return 1.0 - jnp.mean(dice)


if __name__ == "__main__":
    key = jax.random.PRNGKey(0)
    k1, k2, k3, k4, k5, k6 = jax.random.split(key, 6)

    # [N, C, H, W] as in the PyTorch module; d == 1024 -> free-reshape path.
    logits = jax.random.normal(k1, (2, 4, 16, 16), dtype=jnp.float32)
    targets = (jax.random.uniform(k2, (2, 4, 16, 16)) > 0.5).astype(jnp.float32)
    loss = jax.block_until_ready(per_volume_dice_loss(logits, targets))
    ref = jax.block_until_ready(_reference_dice_loss(logits, targets))
    assert jnp.allclose(loss, ref, rtol=1e-4, atol=1e-5), (loss, ref)

    # Narrow native dtypes (bf16 logits + int8 targets): no wrapper up-cast.
    logits_bf16 = logits.astype(jnp.bfloat16)
    targets_i8 = (jax.random.uniform(k2, (2, 4, 16, 16)) > 0.5).astype(jnp.int8)
    loss_n = jax.block_until_ready(per_volume_dice_loss(logits_bf16, targets_i8))
    ref_n = jax.block_until_ready(_reference_dice_loss(logits_bf16, targets_i8))
    assert jnp.allclose(loss_n, ref_n, rtol=1e-3, atol=1e-4), (loss_n, ref_n)

    # Ragged flattened size (d % 128 != 0): exercises the padded + masked path.
    logits2 = jax.random.normal(k3, (2, 3, 10, 12), dtype=jnp.float32)
    targets2 = (jax.random.uniform(k4, (2, 3, 10, 12)) > 0.5).astype(jnp.float32)
    loss2 = jax.block_until_ready(per_volume_dice_loss(logits2, targets2))
    ref2 = jax.block_until_ready(_reference_dice_loss(logits2, targets2))
    assert jnp.allclose(loss2, ref2, rtol=1e-4, atol=1e-5), (loss2, ref2)

    # d % 128 == 0 but rows not a multiple of the block (n_rows=84, block=80):
    # no pad copy, in-kernel masking of the partial last tile only.
    logits3 = jax.random.normal(k5, (2, 3, 28, 128), dtype=jnp.float32)
    targets3 = (jax.random.uniform(k6, (2, 3, 28, 128)) > 0.5).astype(jnp.float32)
    loss3 = jax.block_until_ready(per_volume_dice_loss(logits3, targets3))
    ref3 = jax.block_until_ready(_reference_dice_loss(logits3, targets3))
    assert jnp.allclose(loss3, ref3, rtol=1e-4, atol=1e-5), (loss3, ref3)

    print("KERNEL_OK")
</pallas_src>

<mosaic_0001>
module attributes {stable_mosaic.version = 11 : i64} {
  func.func @_dice_kernel(%arg0: i32, %arg1: i32, %arg2: memref<1x8x128xf32, #tpu.memory_space<vmem>>, %arg3: memref<1x8x128xf32, #tpu.memory_space<vmem>>, %arg4: memref<1x1x1xf32, #tpu.memory_space<vmem>>, %arg5: memref<8x128xf32, #tpu.memory_space<vmem>>, %arg6: memref<8x128xf32, #tpu.memory_space<vmem>>) attributes {dimension_semantics = [#tpu.dimension_semantics<parallel>, #tpu.dimension_semantics<arbitrary>], iteration_bounds = array<i64: 2, 1>, scalar_prefetch = 0 : i64, scratch_operands = 2 : i64, tpu.core_type = #tpu.core_type<tc>, window_params = [{transform_indices = @transform_0, window_bounds = array<i64: 1, 8, 128>}, {transform_indices = @transform_1, window_bounds = array<i64: 1, 8, 128>}, {transform_indices = @transform_2, window_bounds = array<i64: 1, 1, 1>}]} {
    %c0_i32 = arith.constant 0 : i32
    %0 = arith.cmpi eq, %arg1, %c0_i32 : i32
    %1 = arith.extui %0 : i1 to i32
    %c0_i32_0 = arith.constant 0 : i32
    %2 = arith.cmpi ne, %1, %c0_i32_0 : i32
    scf.if %2 {
      %cst_18 = arith.constant 0.000000e+00 : f32
      %27 = vector.broadcast %cst_18 : f32 to vector<8x128xf32>
      %c0_19 = arith.constant 0 : index
      %c0_20 = arith.constant 0 : index
      %28 = vector.load %arg5[%c0_19, %c0_20] : memref<8x128xf32, #tpu.memory_space<vmem>>, vector<8x128xf32>
      tpu.vector_store %arg5[%c0_19, %c0_20], %27 {strides = array<i32>} : memref<8x128xf32, #tpu.memory_space<vmem>>, vector<8x128xf32>,
      %cst_21 = arith.constant 0.000000e+00 : f32
      %29 = vector.broadcast %cst_21 : f32 to vector<8x128xf32>
      %c0_22 = arith.constant 0 : index
      %c0_23 = arith.constant 0 : index
      %30 = vector.load %arg6[%c0_22, %c0_23] : memref<8x128xf32, #tpu.memory_space<vmem>>, vector<8x128xf32>
      tpu.vector_store %arg6[%c0_22, %c0_23], %29 {strides = array<i32>} : memref<8x128xf32, #tpu.memory_space<vmem>>, vector<8x128xf32>,
    } else {
    }
    %c0 = arith.constant 0 : index
    %c0_1 = arith.constant 0 : index
    %c0_2 = arith.constant 0 : index
    %3 = vector.load %arg2[%c0, %c0_1, %c0_2] : memref<1x8x128xf32, #tpu.memory_space<vmem>>, vector<1x8x128xf32>
    %4 = vector.shape_cast %3 : vector<1x8x128xf32> to vector<8x128xf32>
    %c0_3 = arith.constant 0 : index
    %c0_4 = arith.constant 0 : index
    %c0_5 = arith.constant 0 : index
    %5 = vector.load %arg3[%c0_3, %c0_4, %c0_5] : memref<1x8x128xf32, #tpu.memory_space<vmem>>, vector<1x8x128xf32>
    %6 = vector.shape_cast %5 : vector<1x8x128xf32> to vector<8x128xf32>
    %7 = arith.negf %4 : vector<8x128xf32>
    %8 = math.exp %7 : vector<8x128xf32>
    %cst = arith.constant 1.000000e+00 : f32
    %9 = vector.broadcast %cst : f32 to vector<8x128xf32>
    %10 = arith.addf %9, %8 : vector<8x128xf32>
    %11 = arith.divf %9, %10 : vector<8x128xf32>
    %c0_6 = arith.constant 0 : index
    %c0_7 = arith.constant 0 : index
    %12 = vector.load %arg5[%c0_6, %c0_7] : memref<8x128xf32, #tpu.memory_space<vmem>>, vector<8x128xf32>
    %13 = arith.mulf %11, %6 : vector<8x128xf32>
    %14 = vector.shape_cast %13 : vector<8x128xf32> to vector<1x8x128xf32>
    %cst_8 = arith.constant dense<0.000000e+00> : vector<8x128xf32>
    %15 = vector.multi_reduction <add>, %14, %cst_8 [0] : vector<1x8x128xf32> to vector<8x128xf32>
    %16 = arith.addf %12, %15 : vector<8x128xf32>
    %c0_9 = arith.constant 0 : index
    %c0_10 = arith.constant 0 : index
    %17 = vector.load %arg5[%c0_9, %c0_10] : memref<8x128xf32, #tpu.memory_space<vmem>>, vector<8x128xf32>
    tpu.vector_store %arg5[%c0_9, %c0_10], %16 {strides = array<i32>} : memref<8x128xf32, #tpu.memory_space<vmem>>, vector<8x128xf32>,
    %c0_11 = arith.constant 0 : index
    %c0_12 = arith.constant 0 : index
    %18 = vector.load %arg6[%c0_11, %c0_12] : memref<8x128xf32, #tpu.memory_space<vmem>>, vector<8x128xf32>
    %19 = arith.addf %11, %6 : vector<8x128xf32>
    %20 = vector.shape_cast %19 : vector<8x128xf32> to vector<1x8x128xf32>
    %cst_13 = arith.constant dense<0.000000e+00> : vector<8x128xf32>
    %21 = vector.multi_reduction <add>, %20, %cst_13 [0] : vector<1x8x128xf32> to vector<8x128xf32>
    %22 = arith.addf %18, %21 : vector<8x128xf32>
    %c0_14 = arith.constant 0 : index
    %c0_15 = arith.constant 0 : index
    %23 = vector.load %arg6[%c0_14, %c0_15] : memref<8x128xf32, #tpu.memory_space<vmem>>, vector<8x128xf32>
    tpu.vector_store %arg6[%c0_14, %c0_15], %22 {strides = array<i32>} : memref<8x128xf32, #tpu.memory_space<vmem>>, vector<8x128xf32>,
    %c0_i32_16 = arith.constant 0 : i32
    %24 = arith.cmpi eq, %arg1, %c0_i32_16 : i32
    %25 = arith.extui %24 : i1 to i32
    %c0_i32_17 = arith.constant 0 : i32
    %26 = arith.cmpi ne, %25, %c0_i32_17 : i32
    scf.if %26 {
      %c0_18 = arith.constant 0 : index
      %c0_19 = arith.constant 0 : index
      %27 = vector.load %arg5[%c0_18, %c0_19] : memref<8x128xf32, #tpu.memory_space<vmem>>, vector<8x128xf32>
      %28 = vector.shape_cast %27 : vector<8x128xf32> to vector<1x8x128xf32>
      %cst_20 = arith.constant dense<0.000000e+00> : vector<1xf32>
      %29 = vector.multi_reduction <add>, %28, %cst_20 [1, 2] : vector<1x8x128xf32> to vector<1xf32>
      %30 = vector.shape_cast %29 : vector<1xf32> to vector<1x1x1xf32>
      %31 = vector.extract %30[0, 0, 0] : f32 from vector<1x1x1xf32>
      %32 = vector.broadcast %31 : f32 to vector<1x1xf32>
      %c0_21 = arith.constant 0 : index
      %c0_22 = arith.constant 0 : index
      %33 = vector.load %arg6[%c0_21, %c0_22] : memref<8x128xf32, #tpu.memory_space<vmem>>, vector<8x128xf32>
      %34 = vector.shape_cast %33 : vector<8x128xf32> to vector<1x8x128xf32>
      %cst_23 = arith.constant dense<0.000000e+00> : vector<1xf32>
      %35 = vector.multi_reduction <add>, %34, %cst_23 [1, 2] : vector<1x8x128xf32> to vector<1xf32>
      %36 = vector.shape_cast %35 : vector<1xf32> to vector<1x1x1xf32>
      %37 = vector.extract %36[0, 0, 0] : f32 from vector<1x1x1xf32>
      %38 = vector.broadcast %37 : f32 to vector<1x1xf32>
      %cst_24 = arith.constant 2.000000e+00 : f32
      %39 = vector.broadcast %cst_24 : f32 to vector<1x1xf32>
      %40 = arith.mulf %39, %32 : vector<1x1xf32>
      %cst_25 = arith.constant 9.99999997E-7 : f32
      %41 = vector.broadcast %cst_25 : f32 to vector<1x1xf32>
      %42 = arith.addf %40, %41 : vector<1x1xf32>
      %cst_26 = arith.constant 9.99999997E-7 : f32
      %43 = vector.broadcast %cst_26 : f32 to vector<1x1xf32>
      %44 = arith.addf %38, %43 : vector<1x1xf32>
      %45 = arith.divf %42, %44 : vector<1x1xf32>
      %c0_27 = arith.constant 0 : index
      %c0_28 = arith.constant 0 : index
      %c0_29 = arith.constant 0 : index
      %46 = vector.load %arg4[%c0_27, %c0_28, %c0_29] : memref<1x1x1xf32, #tpu.memory_space<vmem>>, vector<1x1x1xf32>
      %47 = vector.shape_cast %46 : vector<1x1x1xf32> to vector<1x1xf32>
      %48 = vector.shape_cast %45 : vector<1x1xf32> to vector<1x1x1xf32>
      tpu.vector_store %arg4[%c0_27, %c0_28, %c0_29], %48 {strides = array<i32>} : memref<1x1x1xf32, #tpu.memory_space<vmem>>, vector<1x1x1xf32>,
    } else {
    }
    return
  }
  func.func @transform_0(%arg0: i32, %arg1: i32) -> (i32, i32, i32) {
    %c0_i32 = arith.constant 0 : i32
    %c0_i32_0 = arith.constant 0 : i32
    return %arg0, %arg1, %c0_i32 : i32, i32, i32
  }
  func.func @transform_1(%arg0: i32, %arg1: i32) -> (i32, i32, i32) {
    %c0_i32 = arith.constant 0 : i32
    %c0_i32_0 = arith.constant 0 : i32
    return %arg0, %arg1, %c0_i32 : i32, i32, i32
  }
  func.func @transform_2(%arg0: i32, %arg1: i32) -> (i32, i32, i32) {
    %c0_i32 = arith.constant 0 : i32
    %c0_i32_0 = arith.constant 0 : i32
    %c0_i32_1 = arith.constant 0 : i32
    return %arg0, %c0_i32, %c0_i32_0 : i32, i32, i32
  }
}

</mosaic_0001>

<llo_original>
// kernel: tpu_custom_call.1
$region0: #{tpu_custom_call.1}
  #allocation0 [shape = 'u32[]', space=smem, size = 0x4, offset = 0x4, fixed_abs, tag = 'smem constant byte address 0x4 - core index']
  #allocation1 [shape = 'u32[72,128]{1,0:T(1,128)}', space=vmem, size = 0x9000, scoped, tag = 'internal scratch']
  #allocation2 [shape = 'f32[8,128]{1,0:T(8,128)}', space=vmem, size = 0x1000, scoped, tag = 'scratch operand']
  #allocation3 [shape = 'f32[8,128]{1,0:T(8,128)}', space=vmem, size = 0x1000, scoped, tag = 'scratch operand']
  %s0 = inlined_call_operand.hbm [shape: f32[2,8,128], index: 0, kind: input, shape index: {}]
  %s1 = inlined_call_operand.hbm [shape: f32[2,8,128], index: 1, kind: input, shape index: {}]
  %s2 = inlined_call_operand.vmem [shape: f32[2,1,1], index: 2, kind: output, shape index: {}]
  %s3 = sld [smem:[#allocation0]]
  $region57: #{tpu_custom_call.1} parent=0
    _
  %s5 = ssub.s32 1, %s3
  %s6 = scalar_select 0, %s5, %s3
  $region1: #{tpu_custom_call.1} parent=0
    #allocation4 [shape = 'u8[8192]{0}', space=vmem, size = 0x2000, scoped, tag = 'input window, operand 0']
    #allocation5 [shape = 's32[2]{0}', space=sflag, size = 0x8, scoped, tag = 'scoped memory for tpu_custom_call.1']
    #allocation6 [shape = 'u8[8192]{0}', space=vmem, size = 0x2000, scoped, tag = 'input window, operand 1']
    #allocation7 [shape = 's32[2]{0}', space=sflag, size = 0x8, scoped, tag = 'scoped memory for tpu_custom_call.1']
    %7 = vsyncpa [#allocation5], 0
    %s8 = scalar_lea.sflag [#allocation5], 1
    %9 = vsyncpa %s8, 0
    %10 = vsyncpa [#allocation7], 0
    %s11 = scalar_lea.sflag [#allocation7], 1
    %12 = vsyncpa %s11, 0
    loop: start=0, step=1, limit=4
    $region2: #{tpu_custom_call.1} parent=1 // loop_pre_header
      _
    $region3: #{tpu_custom_call.1} parent=1 // loop_header
      %s14 = sphi 0, %s18
      %p15 = scmp.ge.s32.totalorder %s14, 4
      %s21 = sphi 0, %s33
      %s22 = sphi 0, %s29
      %s23 = sphi 0, %s21
      %s24 = sphi 0, %s22
      %s25 = sphi 0, %s23
      %s26 = sphi 0, %s24
      %s38 = sphi 0, %s40
      %s41 = sphi 0, %s38
      %s42 = sphi 0, %s41
      %s58 = sphi 0, %s42
      %s66 = sphi 0, %s68
      %s69 = sphi 0, %s66
      %s70 = sphi 0, %s69
      %s86 = sphi 0, %s70
      %s92 = sphi 0, %s94
      %s95 = sphi 0, %s92
      %s96 = sphi 0, %s95
      %s112 = sphi 0, %s96
    $region4: #{tpu_custom_call.1} parent=1 // loop_header_branch
      %17 = sbr.rel (%p15) target = $region8
    $region5: #{tpu_custom_call.1} parent=1 // loop_body
      %s19 = ssub.s32 %s14, 1
      %s20 = ssub.s32 %s14, 2
      %s27 = sadd.s32 1, %s22
      %p28 = scmp.ge.s32.totalorder %s27, 1
      %s29 = scalar_select %p28, 0, %s27
      %s30 = sadd.s32 1, %s21
      %s31 = scalar_select %p28, %s30, %s21
      %p32 = scmp.ge.s32.totalorder %s31, 2
      %s33 = scalar_select %p32, 0, %s31
      %s34 = ssub.s32 %s21, %s33
      %s35 = ssub.s32 %s22, %s29
      %s36 = sor.u32 %s34, %s35
      %p37 = scmp.eq.s32.totalorder %s36, 0
      %s39 = sadd.s32 %s38, 1
      %s40 = scalar_select %p37, %s38, %s39
      %p43 = pneg %p37
      %p44 = scmp.eq.s32.totalorder %s14, 1
      %p45 = por %p43, %p44
      %p46 = scmp.ne.s32.totalorder %s38, %s41
      %p47 = scmp.eq.s32.totalorder %s14, 0
      %p48 = por %p46, %p47
      %p49 = scmp.ne.s32.totalorder %s38, %s41
      %p50 = scmp.eq.s32.totalorder %s19, 1
      %p51 = por %p49, %p50
      %p52 = scmp.ne.s32.totalorder %s41, %s42
      %p53 = scmp.eq.s32.totalorder %s19, 0
      %p54 = por %p52, %p53
      %p55 = scmp.ne.s32.totalorder %s41, %s42
      %p56 = scmp.eq.s32.totalorder %s20, 1
      %p57 = por %p55, %p56
      %p59 = scmp.ne.s32.totalorder %s42, %s58
      %p60 = scmp.eq.s32.totalorder %s20, 0
      %p61 = por %p59, %p60
      %s62 = ssub.s32 %s21, %s33
      %s63 = ssub.s32 %s22, %s29
      %s64 = sor.u32 %s62, %s63
      %p65 = scmp.eq.s32.totalorder %s64, 0
      %s67 = sadd.s32 %s66, 1
      %s68 = scalar_select %p65, %s66, %s67
      %p71 = pneg %p65
      %p72 = scmp.eq.s32.totalorder %s14, 1
      %p73 = por %p71, %p72
      %p74 = scmp.ne.s32.totalorder %s66, %s69
      %p75 = scmp.eq.s32.totalorder %s14, 0
      %p76 = por %p74, %p75
      %p77 = scmp.ne.s32.totalorder %s66, %s69
      %p78 = scmp.eq.s32.totalorder %s19, 1
      %p79 = por %p77, %p78
      %p80 = scmp.ne.s32.totalorder %s69, %s70
      %p81 = scmp.eq.s32.totalorder %s19, 0
      %p82 = por %p80, %p81
      %p83 = scmp.ne.s32.totalorder %s69, %s70
      %p84 = scmp.eq.s32.totalorder %s20, 1
      %p85 = por %p83, %p84
      %p87 = scmp.ne.s32.totalorder %s70, %s86
      %p88 = scmp.eq.s32.totalorder %s20, 0
      %p89 = por %p87, %p88
      %s90 = ssub.s32 %s21, %s33
      %p91 = scmp.eq.s32.totalorder %s90, 0
      %s93 = sadd.s32 %s92, 1
      %s94 = scalar_select %p91, %s92, %s93
      %p97 = pneg %p91
      %p98 = scmp.eq.s32.totalorder %s14, 1
      %p99 = por %p97, %p98
      %p100 = scmp.ne.s32.totalorder %s92, %s95
      %p101 = scmp.eq.s32.totalorder %s14, 0
      %p102 = por %p100, %p101
      %p103 = scmp.ne.s32.totalorder %s92, %s95
      %p104 = scmp.eq.s32.totalorder %s19, 1
      %p105 = por %p103, %p104
      %p106 = scmp.ne.s32.totalorder %s95, %s96
      %p107 = scmp.eq.s32.totalorder %s19, 0
      %p108 = por %p106, %p107
      %p109 = scmp.ne.s32.totalorder %s95, %s96
      %p110 = scmp.eq.s32.totalorder %s20, 1
      %p111 = por %p109, %p110
      %p113 = scmp.ne.s32.totalorder %s96, %s112
      %p114 = scmp.eq.s32.totalorder %s20, 0
      %p115 = por %p113, %p114
      %p116 = scmp.le.s32.totalorder 1, %s14
      %p117 = scmp.lt.s32.totalorder %s14, 3
      %p118 = pnand %p116, %p117
      %p119 = pneg %p118
      // Predicated region
      $region9: #{tpu_custom_call.1} parent=5 // pred_check
        _
      $region10: #{tpu_custom_call.1} parent=5 // pred_check_branch
        %121 = sbr.rel (%p118) target = $region12
      $region11: #{tpu_custom_call.1} parent=5 // pred_region
        %s122 = ssub.s32 %s14, 1
      $region12: #{tpu_custom_call.1} parent=5 // pred_fallthru
        _
      %p123 = scmp.lt.s32.totalorder %s14, 2
      // Predicated region
      $region13: #{tpu_custom_call.1} parent=5 // pred_check
        %p124 = pneg %p123
      $region14: #{tpu_custom_call.1} parent=5 // pred_check_branch
        %126 = sbr.rel (%p124) target = $region16
      $region15: #{tpu_custom_call.1} parent=5 // pred_region
        // Predicated region
        $region17: #{tpu_custom_call.1} parent=15 // pred_check
          %p127 = pneg %p48
        $region18: #{tpu_custom_call.1} parent=15 // pred_check_branch
          %129 = sbr.rel (%p127) target = $region20
        $region19: #{tpu_custom_call.1} parent=15 // pred_region
          %s130 = sand.u32 %s38, 1
          %s131 = scalar_lea.sflag [#allocation5], %s130
          %s132 = sand.u32 %s38, 1
          %s133 = smul.addr %s132, 8
          %s134 = scalar_lea.vmem [#allocation4], %s133
          %136 = vsyncadd %s131, 0
          %s137 = sadd.s32 %s22, %s21
          %s138 = smul.addr %s137, 8
          %s139 = scalar_lea.hbm %s0, %s138
          %s141 = sshll.u32 %s139, 4
          %s142 = int_to_ptr.hbm [resolvable:$true] %s141
          %s143 = sshll.u32 %s134, 4
          %s144 = int_to_ptr.vmem [resolvable:$true] %s143
          %146 = dma.hbm_to_vmem [thread:$0]  %s142, 128, %s144, %s131
        $region20: #{tpu_custom_call.1} parent=15 // pred_fallthru
          _
        // Predicated region
        $region21: #{tpu_custom_call.1} parent=15 // pred_check
          %p147 = pneg %p76
        $region22: #{tpu_custom_call.1} parent=15 // pred_check_branch
          %149 = sbr.rel (%p147) target = $region24
        $region23: #{tpu_custom_call.1} parent=15 // pred_region
          %s150 = sand.u32 %s66, 1
          %s151 = scalar_lea.sflag [#allocation7], %s150
          %s152 = sand.u32 %s66, 1
          %s153 = smul.addr %s152, 8
          %s154 = scalar_lea.vmem [#allocation6], %s153
          %156 = vsyncadd %s151, 0
          %s157 = sadd.s32 %s22, %s21
          %s158 = smul.addr %s157, 8
          %s159 = scalar_lea.hbm %s1, %s158
          %s161 = sshll.u32 %s159, 4
          %s162 = int_to_ptr.hbm [resolvable:$true] %s161
          %s163 = sshll.u32 %s154, 4
          %s164 = int_to_ptr.vmem [resolvable:$true] %s163
          %166 = dma.hbm_to_vmem [thread:$0]  %s162, 128, %s164, %s151
        $region24: #{tpu_custom_call.1} parent=15 // pred_fallthru
          _
      $region16: #{tpu_custom_call.1} parent=5 // pred_fallthru
        _
      %p167 = scmp.le.s32.totalorder 1, %s14
      %p168 = scmp.lt.s32.totalorder %s14, 3
      %p169 = pnand %p167, %p168
      %p170 = pneg %p169
      // Predicated region
      $region25: #{tpu_custom_call.1} parent=5 // pred_check
        _
      $region26: #{tpu_custom_call.1} parent=5 // pred_check_branch
        %172 = sbr.rel (%p169) target = $region28
      $region27: #{tpu_custom_call.1} parent=5 // pred_region
        %s173 = ssub.s32 %s14, 1
        %s174 = sand.u32 %s41, 1
        %s175 = scalar_lea.sflag [#allocation5], %s174
        %s176 = sand.u32 %s41, 1
        %s177 = smul.addr %s176, 8
        %s178 = scalar_lea.vmem [#allocation4], %s177
        // Predicated region
        $region29: #{tpu_custom_call.1} parent=27 // pred_check
          %p179 = pneg %p54
        $region30: #{tpu_custom_call.1} parent=27 // pred_check_branch
          %181 = sbr.rel (%p179) target = $region32
        $region31: #{tpu_custom_call.1} parent=27 // pred_region
          %183 = dma.done %s175, 128
        $region32: #{tpu_custom_call.1} parent=27 // pred_fallthru
          _
        %s184 = sand.u32 %s69, 1
        %s185 = scalar_lea.sflag [#allocation7], %s184
        %s186 = sand.u32 %s69, 1
        %s187 = smul.addr %s186, 8
        %s188 = scalar_lea.vmem [#allocation6], %s187
        // Predicated region
        $region33: #{tpu_custom_call.1} parent=27 // pred_check
          %p189 = pneg %p82
        $region34: #{tpu_custom_call.1} parent=27 // pred_check_branch
          %191 = sbr.rel (%p189) target = $region36
        $region35: #{tpu_custom_call.1} parent=27 // pred_region
          %193 = dma.done %s185, 128
        $region36: #{tpu_custom_call.1} parent=27 // pred_fallthru
          _
        %s194 = sand.u32 %s41, 1
        %s195 = scalar_lea.sflag [#allocation5], %s194
        %s196 = sand.u32 %s41, 1
        %s197 = smul.addr %s196, 8
        %s198 = scalar_lea.vmem [#allocation4], %s197
        %p199 = pneg %p54
        %p200 = pneg %p51
        %s201 = sand.u32 %s69, 1
        %s202 = scalar_lea.sflag [#allocation7], %s201
        %s203 = sand.u32 %s69, 1
        %s204 = smul.addr %s203, 8
        %s205 = scalar_lea.vmem [#allocation6], %s204
        %p206 = pneg %p82
        %p207 = pneg %p79
        %p208 = pneg %p108
        %p209 = pneg %p105
        %p210 = scmp.lt.s32.totalorder %s23, 1
        %s211 = scalar_select %p210, %s23, 1
        %s212 = scalar_lea.vmem %s2, %s211
        %p213 = scmp.lt.s32.totalorder %s23, 1
        %s214 = scalar_select %p213, %s23, 1
        %s215 = scalar_lea.vmem %s2, %s214
        %p216 = scmp.eq.s32.totalorder %s24, 0
        // Predicated region
        $region37: #{tpu_custom_call.1} parent=27 // pred_check
          %p217 = pneg %p216
        $region38: #{tpu_custom_call.1} parent=27 // pred_check_branch
          %219 = sbr.rel (%p217) target = $region40
        $region39: #{tpu_custom_call.1} parent=27 // pred_region
          %220 = vst [vmem:[#allocation2] sm:$0xff] 0.0
          %221 = vst [vmem:[#allocation3] sm:$0xff] 0.0
        $region40: #{tpu_custom_call.1} parent=27 // pred_fallthru
          _
        %v222 = vld [vmem:[%s178] sm:$0xff]
        %v223 = vld [vmem:[%s188] sm:$0xff]
        %v224 = vxor.u32 %v222, 2147483648
        %v225 = vmul.f32 %v224, 1.442695
        %v226 = vpow.pop %v225
        %v227 = vadd.f32 %v226, 1.0
        %v228 = vrcp.pop %v227
        %v229 = vmul.f32 %v227, %v228
        %v230 = vsub.f32 1.0, %v229
        %v231 = vmul.f32 %v228, %v230
        %v232 = vadd.f32 %v228, %v231
        %vm233 = vweird.f32 %v227
        %vm234 = vweird.f32 %v228
        %vm235 = vmor %vm233, %vm234
        %v236 = vsel %vm235, %v228, %v232
        %v237 = vand.u32 2147483647, %v227
        %vm238 = vcmp.eq.f32.partialorder %v237, 8.507059e+37
        %v239 = vand.u32 %v227, 2147483648
        %v240 = vor.u32 1.1754944e-38, %v239
        %v241 = vsel %vm238, %v240, %v236
        %v242 = vmul.f32 1.0, %v241
        %v243 = vld [vmem:[#allocation2] sm:$0xff]
        %v244 = vmul.f32 %v242, %v223
        %v245 = vadd.f32 %v244, 0.0
        %v246 = vadd.f32 %v243, %v245
        %247 = vst [vmem:[#allocation2] sm:$0xff] %v246
        %v248 = vld [vmem:[#allocation3] sm:$0xff]
        %v249 = vadd.f32 %v242, %v223
        %v250 = vadd.f32 %v249, 0.0
        %v251 = vadd.f32 %v248, %v250
        %252 = vst [vmem:[#allocation3] sm:$0xff] %v251
        // Predicated region
        $region41: #{tpu_custom_call.1} parent=27 // pred_check
          %p253 = pneg %p216
        $region42: #{tpu_custom_call.1} parent=27 // pred_check_branch
          %255 = sbr.rel (%p253) target = $region44
        $region43: #{tpu_custom_call.1} parent=27 // pred_region
          %v256 = vld [vmem:[#allocation2] sm:$0xff]
          %257 = vadd.xlane.f32.xlu0 %v256
          %v258 = vpop.xlane.xlu0 %257
          %v259 = vrot.slane %v258, 4
          %v260 = vadd.f32 %v258, %v259
          %v261 = vrot.slane %v260, 2
          %v262 = vadd.f32 %v260, %v261
          %v263 = vrot.slane %v262, 1
          %v264 = vadd.f32 %v262, %v263
          %s265 = vtos %v264
          %v266 = vstv %s265
          %v267 = vld [vmem:[#allocation3] sm:$0xff]
          %268 = vadd.xlane.f32.xlu0 %v267
          %v269 = vpop.xlane.xlu0 %268
          %v270 = vrot.slane %v269, 4
          %v271 = vadd.f32 %v269, %v270
          %v272 = vrot.slane %v271, 2
          %v273 = vadd.f32 %v271, %v272
          %v274 = vrot.slane %v273, 1
          %v275 = vadd.f32 %v273, %v274
          %s276 = vtos %v275
          %v277 = vstv %s276
          %v278 = vmul.f32 %v266, 2.0
          %v279 = vadd.f32 %v278, 1e-06
          %v280 = vadd.f32 %v277, 1e-06
          %v281 = vrcp.pop %v280
          %v282 = vmul.f32 %v280, %v281
          %v283 = vsub.f32 1.0, %v282
          %v284 = vmul.f32 %v281, %v283
          %v285 = vadd.f32 %v281, %v284
          %vm286 = vweird.f32 %v280
          %vm287 = vweird.f32 %v281
          %vm288 = vmor %vm286, %vm287
          %v289 = vsel %vm288, %v281, %v285
          %v290 = vand.u32 2147483647, %v280
          %vm291 = vcmp.eq.f32.partialorder %v290, 8.507059e+37
          %v292 = vand.u32 %v280, 2147483648
          %v293 = vor.u32 1.1754944e-38, %v292
          %v294 = vsel %vm291, %v293, %v289
          %v295 = vmul.f32 %v279, %v294
          %vm296 = vcmask 0
          %297 = vst.msk [vmem:[%s215] sm:$0x1] %vm296, %v295
        $region44: #{tpu_custom_call.1} parent=27 // pred_fallthru
          _
        %p298 = scmp.lt.s32.totalorder %s23, 1
        %s299 = scalar_select %p298, %s23, 1
        %s300 = scalar_lea.vmem %s2, %s299
        // Predicated region
        $region45: #{tpu_custom_call.1} parent=27 // pred_check
          %p301 = pneg %p105
        $region46: #{tpu_custom_call.1} parent=27 // pred_check_branch
          %303 = sbr.rel (%p301) target = $region48
        $region47: #{tpu_custom_call.1} parent=27 // pred_region
          _
        $region48: #{tpu_custom_call.1} parent=27 // pred_fallthru
          _
      $region28: #{tpu_custom_call.1} parent=5 // pred_fallthru
        _
      %p304 = scmp.le.s32.totalorder 2, %s14
      // Predicated region
      $region49: #{tpu_custom_call.1} parent=5 // pred_check
        %p305 = pneg %p304
      $region50: #{tpu_custom_call.1} parent=5 // pred_check_branch
        %307 = sbr.rel (%p305) target = $region52
      $region51: #{tpu_custom_call.1} parent=5 // pred_region
        %s308 = ssub.s32 %s14, 2
        // Predicated region
        $region53: #{tpu_custom_call.1} parent=51 // pred_check
          %p309 = pneg %p111
        $region54: #{tpu_custom_call.1} parent=51 // pred_check_branch
          %311 = sbr.rel (%p309) target = $region56
        $region55: #{tpu_custom_call.1} parent=51 // pred_region
          %p312 = scmp.lt.s32.totalorder %s25, 1
          %s313 = scalar_select %p312, %s25, 1
          %s314 = scalar_lea.vmem %s2, %s313
        $region56: #{tpu_custom_call.1} parent=51 // pred_fallthru
          _
      $region52: #{tpu_custom_call.1} parent=5 // pred_fallthru
        _
    $region6: #{tpu_custom_call.1} parent=1 // loop_footer
      %s18 = sadd.s32 1, %s14
    $region7: #{tpu_custom_call.1} parent=1 // loop_footer_branch
      %13 = sbr.rel target = $region3
    $region8: #{tpu_custom_call.1} parent=1 // loop_exit
      _
    %315 = vsyncpa [#allocation5], 1
    %s316 = scalar_lea.sflag [#allocation5], 1
    %317 = vsyncpa %s316, 1
    %318 = vsyncpa [#allocation7], 1
    %s319 = scalar_lea.sflag [#allocation7], 1
    %320 = vsyncpa %s319, 1

</llo_original>
